<compile_context>
chip_gen: v6e
topology: v6e:2x2x1
jax: 0.10.0
libtpu: 0.0.40
codegen_flags: <defaults>
</compile_context>

<pallas_src>
import jax
import jax.numpy as jnp
from jax.experimental import pallas as pl
from jax.experimental.pallas import tpu as pltpu

LATENT_DIM = 2
HIDDEN_DIM = 32
INPUT_DIM = 64
BATCH = 8
PARAM_LANES = 128
PACKED_ROWS = 72  # 72 rows * 128 lanes * 4 B = 36 KiB (real data ~26 KiB)


def _round8(n):
    return ((n + 7) // 8) * 8


# name -> (row_off, col_off, rows, cols) inside the packed (72, 128) buffer.
# All weight blocks start on 8-row boundaries; lane offsets are static slices.
PARAM_SLICES = {
    # 64-row stripe (rows 0:64)
    "ew1":  (0,  0,  INPUT_DIM,  HIDDEN_DIM),       # encoder.fc1 W  (64, 32)
    "dw3":  (0,  32, HIDDEN_DIM, INPUT_DIM),        # decoder.fc3 W  (32, 64)
    "ew2":  (0,  96, HIDDEN_DIM, HIDDEN_DIM),       # encoder.fc2 W  (32, 32)
    "dw2":  (32, 96, HIDDEN_DIM, HIDDEN_DIM),       # decoder.fc2 W  (32, 32)
    "ew34": (32, 32, HIDDEN_DIM, 2 * LATENT_DIM),   # fused fc3|fc4 W (32, 4)
    "dw1":  (32, 64, LATENT_DIM, HIDDEN_DIM),       # decoder.fc1 W  (2, 32)
    # bias stripe (rows 64:72)
    "eb1":  (64, 0,  1, HIDDEN_DIM),
    "eb2":  (64, 32, 1, HIDDEN_DIM),
    "db1":  (64, 64, 1, HIDDEN_DIM),
    "db2":  (64, 96, 1, HIDDEN_DIM),
    "db3":  (65, 0,  1, INPUT_DIM),
    "eb34": (65, 64, 1, 2 * LATENT_DIM),
}


def vae_kernel(x_ref, eps_ref, params_ref, xhat_ref, ml_ref):
    def p(name):
        r0, c0, r, c = PARAM_SLICES[name]
        return params_ref[r0:r0 + r, c0:c0 + c]

    x = x_ref[...]
    eps = eps_ref[...]

    # ---- Encoder ----
    h = jnp.dot(x, p("ew1"), preferred_element_type=jnp.float32) + p("eb1")
    h = jnp.maximum(h, 0.0)
    h = jnp.dot(h, p("ew2"), preferred_element_type=jnp.float32) + p("eb2")
    h = jnp.maximum(h, 0.0)
    # Fused mu/logvar head: one (rows,32)x(32,4) matmul.
    ml = jnp.dot(h, p("ew34"), preferred_element_type=jnp.float32) + p("eb34")
    mu = ml[:, 0:LATENT_DIM]
    logvar = ml[:, LATENT_DIM:2 * LATENT_DIM]

    # ---- Reparametrization: z = mu + eps * exp(0.5 * logvar) ----
    z = mu + eps * jnp.exp(0.5 * logvar)

    # ---- Decoder (K=2 first layer on the otherwise-idle MXU) ----
    d = jnp.dot(z, p("dw1"), preferred_element_type=jnp.float32) + p("db1")
    d = jnp.maximum(d, 0.0)
    d = jnp.dot(d, p("dw2"), preferred_element_type=jnp.float32) + p("db2")
    d = jnp.maximum(d, 0.0)
    logits = jnp.dot(d, p("dw3"), preferred_element_type=jnp.float32) + p("db3")

    # Direct sub-slab stores (no concatenate / pad temps).
    xhat_ref[...] = jax.nn.sigmoid(logits)
    ml_ref[...] = ml


def vae_forward(x, eps, packed_params, *, block_rows=1024, min_grid_steps=4):
    """Runs the fused VAE forward. Returns (x_hat, mean, logvar)."""
    B = x.shape[0]
    b8 = _round8(B)
    # Cap br so the batch grid keeps >= min_grid_steps steps (v7x: both TCs busy),
    # but never below one 8-row sublane tile.
    target = _round8(max(8, -(-b8 // min_grid_steps)))
    br = max(8, min(block_rows, target))
    b_pad = ((B + br - 1) // br) * br
    if b_pad != B:
        x = jnp.pad(x, ((0, b_pad - B), (0, 0)))
        eps = jnp.pad(eps, ((0, b_pad - B), (0, 0)))
    n_steps = b_pad // br

    # Rough double-buffered VMEM footprint (each <=128-lane block pads to 128 lanes
    # in VMEM): 4 streaming arrays (x, eps, x_hat, ml) + resident params.
    vmem_est = 2 * 4 * br * 128 * 4 + 2 * PACKED_ROWS * PARAM_LANES * 4
    cp_kwargs = dict(dimension_semantics=("parallel",))
    if vmem_est > 12 * 1024 * 1024:  # only needed for big block_rows sweeps (v5e default 16 MiB)
        cp_kwargs["vmem_limit_bytes"] = int(vmem_est + (4 << 20))

    flops_per_row = 2 * (INPUT_DIM * HIDDEN_DIM + HIDDEN_DIM * HIDDEN_DIM
                         + HIDDEN_DIM * 2 * LATENT_DIM + LATENT_DIM * HIDDEN_DIM
                         + HIDDEN_DIM * HIDDEN_DIM + HIDDEN_DIM * INPUT_DIM)
    cost = pl.CostEstimate(
        flops=flops_per_row * b_pad,
        transcendentals=(LATENT_DIM + INPUT_DIM) * b_pad,
        bytes_accessed=b_pad * (INPUT_DIM + LATENT_DIM + INPUT_DIM + 2 * LATENT_DIM) * 4
        + PACKED_ROWS * PARAM_LANES * 4,
    )

    xhat, ml = pl.pallas_call(
        vae_kernel,
        out_shape=(
            jax.ShapeDtypeStruct((b_pad, INPUT_DIM), jnp.float32),
            jax.ShapeDtypeStruct((b_pad, 2 * LATENT_DIM), jnp.float32),
        ),
        grid_spec=pltpu.PrefetchScalarGridSpec(
            num_scalar_prefetch=0,
            grid=(n_steps,),
            in_specs=[
                pl.BlockSpec((br, INPUT_DIM), lambda i: (i, 0)),
                pl.BlockSpec((br, LATENT_DIM), lambda i: (i, 0)),
                # Dense packed params: one block, resident across all grid steps.
                pl.BlockSpec((PACKED_ROWS, PARAM_LANES), lambda i: (0, 0)),
            ],
            out_specs=[
                pl.BlockSpec((br, INPUT_DIM), lambda i: (i, 0)),
                pl.BlockSpec((br, 2 * LATENT_DIM), lambda i: (i, 0)),
            ],
        ),
        compiler_params=pltpu.CompilerParams(**cp_kwargs),
        cost_estimate=cost,
    )(x, eps, packed_params)

    x_hat = xhat[:B]
    mu = ml[:B, 0:LATENT_DIM]
    logvar = ml[:B, LATENT_DIM:2 * LATENT_DIM]
    return x_hat, mu, logvar


def init_params(key):
    """Deterministic synthetic parameters matching the PyTorch module's shapes.

    nn.Linear(in, out) has weight (out, in); we store the transpose (in, out)."""
    def linear(key, fan_in, fan_out):
        kw, kb = jax.random.split(key)
        scale = 1.0 / jnp.sqrt(fan_in)
        w = jax.random.uniform(kw, (fan_in, fan_out), jnp.float32, -scale, scale)
        b = jax.random.uniform(kb, (1, fan_out), jnp.float32, -scale, scale)
        return w, b

    keys = jax.random.split(key, 7)
    ew1, eb1 = linear(keys[0], INPUT_DIM, HIDDEN_DIM)    # encoder.fc1
    ew2, eb2 = linear(keys[1], HIDDEN_DIM, HIDDEN_DIM)   # encoder.fc2
    ew3, eb3 = linear(keys[2], HIDDEN_DIM, LATENT_DIM)   # encoder.fc3 (mu)
    ew4, eb4 = linear(keys[3], HIDDEN_DIM, LATENT_DIM)   # encoder.fc4 (logvar)
    dw1, db1 = linear(keys[4], LATENT_DIM, HIDDEN_DIM)   # decoder.fc1
    dw2, db2 = linear(keys[5], HIDDEN_DIM, HIDDEN_DIM)   # decoder.fc2
    dw3, db3 = linear(keys[6], HIDDEN_DIM, INPUT_DIM)    # decoder.fc3
    return (ew1, eb1, ew2, eb2, ew3, eb3, ew4, eb4,
            dw1, db1, dw2, db2, dw3, db3)


def pack_params(params):
    """Fuse mu/logvar heads and densely pack everything into one (72, 128) buffer."""
    (ew1, eb1, ew2, eb2, ew3, eb3, ew4, eb4,
     dw1, db1, dw2, db2, dw3, db3) = params
    fused = {
        "ew1": ew1, "eb1": eb1, "ew2": ew2, "eb2": eb2,
        "ew34": jnp.concatenate([ew3, ew4], axis=1),
        "eb34": jnp.concatenate([eb3, eb4], axis=1),
        "dw1": dw1, "db1": db1, "dw2": dw2, "db2": db2,
        "dw3": dw3, "db3": db3,
    }
    buf = jnp.zeros((PACKED_ROWS, PARAM_LANES), jnp.float32)
    for name, (r0, c0, r, c) in PARAM_SLICES.items():
        blk = fused[name]
        assert blk.shape == (r, c), (name, blk.shape, (r, c))
        buf = buf.at[r0:r0 + r, c0:c0 + c].set(blk)
    return buf


def vae_reference(x, eps, params):
    """Pure-JAX reference of the PyTorch forward pass."""
    (ew1, eb1, ew2, eb2, ew3, eb3, ew4, eb4,
     dw1, db1, dw2, db2, dw3, db3) = params
    h = jnp.maximum(x @ ew1 + eb1, 0.0)
    h = jnp.maximum(h @ ew2 + eb2, 0.0)
    mu = h @ ew3 + eb3
    logvar = h @ ew4 + eb4
    z = mu + eps * jnp.exp(0.5 * logvar)
    d = jnp.maximum(z @ dw1 + db1, 0.0)
    d = jnp.maximum(d @ dw2 + db2, 0.0)
    x_hat = jax.nn.sigmoid(d @ dw3 + db3)
    return x_hat, mu, logvar


if __name__ == "__main__":
    key = jax.random.PRNGKey(0)
    k_x, k_eps, k_p = jax.random.split(key, 3)

    x = jax.random.uniform(k_x, (BATCH, INPUT_DIM), jnp.float32)
    # eps corresponds to torch.randn_like(logvar); generated host-side for
    # determinism and passed into the kernel.
    eps = jax.random.normal(k_eps, (BATCH, LATENT_DIM), jnp.float32)
    params = init_params(k_p)
    packed = pack_params(params)

    x_hat, mean, logvar = vae_forward(x, eps, packed)
    jax.block_until_ready((x_hat, mean, logvar))

    # sanity check against pure-JAX reference
    ref_xhat, ref_mu, ref_lv = vae_reference(x, eps, params)
    assert jnp.allclose(x_hat, ref_xhat, atol=1e-5, rtol=1e-5)
    assert jnp.allclose(mean, ref_mu, atol=1e-5, rtol=1e-5)
    assert jnp.allclose(logvar, ref_lv, atol=1e-5, rtol=1e-5)

    print("KERNEL_OK")
</pallas_src>

<mosaic_0001>
module attributes {stable_mosaic.version = 11 : i64} {
  func.func @vae_kernel(%arg0: i32, %arg1: memref<8x64xf32, #tpu.memory_space<vmem>>, %arg2: memref<8x2xf32, #tpu.memory_space<vmem>>, %arg3: memref<72x128xf32, #tpu.memory_space<vmem>>, %arg4: memref<8x64xf32, #tpu.memory_space<vmem>>, %arg5: memref<8x4xf32, #tpu.memory_space<vmem>>) attributes {dimension_semantics = [#tpu.dimension_semantics<parallel>], iteration_bounds = array<i64: 1>, scalar_prefetch = 0 : i64, scratch_operands = 0 : i64, tpu.core_type = #tpu.core_type<tc>, window_params = [{transform_indices = @transform_0, window_bounds = array<i64: 8, 64>}, {transform_indices = @transform_1, window_bounds = array<i64: 8, 2>}, {pipeline_mode = #tpu.pipeline_mode<synchronous>, transform_indices = @transform_2, window_bounds = array<i64: 72, 128>}, {transform_indices = @transform_3, window_bounds = array<i64: 8, 64>}, {transform_indices = @transform_4, window_bounds = array<i64: 8, 4>}]} {
    %c0 = arith.constant 0 : index
    %c0_0 = arith.constant 0 : index
    %0 = vector.load %arg1[%c0, %c0_0] : memref<8x64xf32, #tpu.memory_space<vmem>>, vector<8x64xf32>
    %c0_1 = arith.constant 0 : index
    %c0_2 = arith.constant 0 : index
    %1 = vector.load %arg2[%c0_1, %c0_2] : memref<8x2xf32, #tpu.memory_space<vmem>>, vector<8x2xf32>
    %c0_3 = arith.constant 0 : index
    %c0_4 = arith.constant 0 : index
    %2 = vector.load %arg3[%c0_3, %c0_4] : memref<72x128xf32, #tpu.memory_space<vmem>>, vector<64x32xf32>
    %cst = arith.constant dense<0.000000e+00> : vector<8x32xf32>
    %3 = tpu.matmul %0, %2, %cst {dimension_numbers = #tpu.dot_dimension_numbers<[1], [0], [0], [1], [0, 0, 1, 1], [], []>} : vector<8x64xf32>, vector<64x32xf32>, vector<8x32xf32> -> vector<8x32xf32>
    %c64 = arith.constant 64 : index
    %c0_5 = arith.constant 0 : index
    %4 = vector.load %arg3[%c64, %c0_5] : memref<72x128xf32, #tpu.memory_space<vmem>>, vector<1x32xf32>
    %5 = vector.broadcast %4 : vector<1x32xf32> to vector<8x32xf32>
    %6 = arith.addf %3, %5 : vector<8x32xf32>
    %cst_6 = arith.constant 0.000000e+00 : f32
    %7 = vector.broadcast %cst_6 : f32 to vector<8x32xf32>
    %8 = arith.maximumf %6, %7 : vector<8x32xf32>
    %c0_7 = arith.constant 0 : index
    %c96 = arith.constant 96 : index
    %9 = vector.load %arg3[%c0_7, %c96] : memref<72x128xf32, #tpu.memory_space<vmem>>, vector<32x32xf32>
    %cst_8 = arith.constant dense<0.000000e+00> : vector<8x32xf32>
    %10 = tpu.matmul %8, %9, %cst_8 {dimension_numbers = #tpu.dot_dimension_numbers<[1], [0], [0], [1], [0, 0, 1, 1], [], []>} : vector<8x32xf32>, vector<32x32xf32>, vector<8x32xf32> -> vector<8x32xf32>
    %c64_9 = arith.constant 64 : index
    %c32 = arith.constant 32 : index
    %11 = vector.load %arg3[%c64_9, %c32] : memref<72x128xf32, #tpu.memory_space<vmem>>, vector<1x32xf32>
    %12 = vector.broadcast %11 : vector<1x32xf32> to vector<8x32xf32>
    %13 = arith.addf %10, %12 : vector<8x32xf32>
    %cst_10 = arith.constant 0.000000e+00 : f32
    %14 = vector.broadcast %cst_10 : f32 to vector<8x32xf32>
    %15 = arith.maximumf %13, %14 : vector<8x32xf32>
    %c32_11 = arith.constant 32 : index
    %c32_12 = arith.constant 32 : index
    %16 = vector.load %arg3[%c32_11, %c32_12] : memref<72x128xf32, #tpu.memory_space<vmem>>, vector<32x4xf32>
    %cst_13 = arith.constant dense<0.000000e+00> : vector<8x4xf32>
    %17 = tpu.matmul %15, %16, %cst_13 {dimension_numbers = #tpu.dot_dimension_numbers<[1], [0], [0], [1], [0, 0, 1, 1], [], []>} : vector<8x32xf32>, vector<32x4xf32>, vector<8x4xf32> -> vector<8x4xf32>
    %c65 = arith.constant 65 : index
    %c64_14 = arith.constant 64 : index
    %18 = vector.load %arg3[%c65, %c64_14] : memref<72x128xf32, #tpu.memory_space<vmem>>, vector<1x4xf32>
    %19 = vector.broadcast %18 : vector<1x4xf32> to vector<8x4xf32>
    %20 = arith.addf %17, %19 : vector<8x4xf32>
    %21 = vector.extract_strided_slice %20 {offsets = [0, 0], sizes = [8, 2], strides = [1, 1]} : vector<8x4xf32> to vector<8x2xf32>
    %22 = vector.extract_strided_slice %20 {offsets = [0, 2], sizes = [8, 2], strides = [1, 1]} : vector<8x4xf32> to vector<8x2xf32>
    %cst_15 = arith.constant 5.000000e-01 : f32
    %23 = vector.broadcast %cst_15 : f32 to vector<8x2xf32>
    %24 = arith.mulf %23, %22 : vector<8x2xf32>
    %25 = math.exp %24 : vector<8x2xf32>
    %26 = arith.mulf %1, %25 : vector<8x2xf32>
    %27 = arith.addf %21, %26 : vector<8x2xf32>
    %c32_16 = arith.constant 32 : index
    %c64_17 = arith.constant 64 : index
    %28 = vector.load %arg3[%c32_16, %c64_17] : memref<72x128xf32, #tpu.memory_space<vmem>>, vector<2x32xf32>
    %cst_18 = arith.constant dense<0.000000e+00> : vector<8x32xf32>
    %29 = tpu.matmul %27, %28, %cst_18 {dimension_numbers = #tpu.dot_dimension_numbers<[1], [0], [0], [1], [0, 0, 1, 1], [], []>} : vector<8x2xf32>, vector<2x32xf32>, vector<8x32xf32> -> vector<8x32xf32>
    %c64_19 = arith.constant 64 : index
    %c64_20 = arith.constant 64 : index
    %30 = vector.load %arg3[%c64_19, %c64_20] : memref<72x128xf32, #tpu.memory_space<vmem>>, vector<1x32xf32>
    %31 = vector.broadcast %30 : vector<1x32xf32> to vector<8x32xf32>
    %32 = arith.addf %29, %31 : vector<8x32xf32>
    %cst_21 = arith.constant 0.000000e+00 : f32
    %33 = vector.broadcast %cst_21 : f32 to vector<8x32xf32>
    %34 = arith.maximumf %32, %33 : vector<8x32xf32>
    %c32_22 = arith.constant 32 : index
    %c96_23 = arith.constant 96 : index
    %35 = vector.load %arg3[%c32_22, %c96_23] : memref<72x128xf32, #tpu.memory_space<vmem>>, vector<32x32xf32>
    %cst_24 = arith.constant dense<0.000000e+00> : vector<8x32xf32>
    %36 = tpu.matmul %34, %35, %cst_24 {dimension_numbers = #tpu.dot_dimension_numbers<[1], [0], [0], [1], [0, 0, 1, 1], [], []>} : vector<8x32xf32>, vector<32x32xf32>, vector<8x32xf32> -> vector<8x32xf32>
    %c64_25 = arith.constant 64 : index
    %c96_26 = arith.constant 96 : index
    %37 = vector.load %arg3[%c64_25, %c96_26] : memref<72x128xf32, #tpu.memory_space<vmem>>, vector<1x32xf32>
    %38 = vector.broadcast %37 : vector<1x32xf32> to vector<8x32xf32>
    %39 = arith.addf %36, %38 : vector<8x32xf32>
    %cst_27 = arith.constant 0.000000e+00 : f32
    %40 = vector.broadcast %cst_27 : f32 to vector<8x32xf32>
    %41 = arith.maximumf %39, %40 : vector<8x32xf32>
    %c0_28 = arith.constant 0 : index
    %c32_29 = arith.constant 32 : index
    %42 = vector.load %arg3[%c0_28, %c32_29] : memref<72x128xf32, #tpu.memory_space<vmem>>, vector<32x64xf32>
    %cst_30 = arith.constant dense<0.000000e+00> : vector<8x64xf32>
    %43 = tpu.matmul %41, %42, %cst_30 {dimension_numbers = #tpu.dot_dimension_numbers<[1], [0], [0], [1], [0, 0, 1, 1], [], []>} : vector<8x32xf32>, vector<32x64xf32>, vector<8x64xf32> -> vector<8x64xf32>
    %c65_31 = arith.constant 65 : index
    %c0_32 = arith.constant 0 : index
    %44 = vector.load %arg3[%c65_31, %c0_32] : memref<72x128xf32, #tpu.memory_space<vmem>>, vector<1x64xf32>
    %45 = vector.broadcast %44 : vector<1x64xf32> to vector<8x64xf32>
    %46 = arith.addf %43, %45 : vector<8x64xf32>
    %47 = arith.negf %46 : vector<8x64xf32>
    %48 = math.exp %47 : vector<8x64xf32>
    %cst_33 = arith.constant 1.000000e+00 : f32
    %49 = vector.broadcast %cst_33 : f32 to vector<8x64xf32>
    %50 = arith.addf %49, %48 : vector<8x64xf32>
    %51 = arith.divf %49, %50 : vector<8x64xf32>
    %c0_34 = arith.constant 0 : index
    %c0_35 = arith.constant 0 : index
    %52 = vector.load %arg4[%c0_34, %c0_35] : memref<8x64xf32, #tpu.memory_space<vmem>>, vector<8x64xf32>
    tpu.vector_store %arg4[%c0_34, %c0_35], %51 {strides = array<i32>} : memref<8x64xf32, #tpu.memory_space<vmem>>, vector<8x64xf32>,
    %c0_36 = arith.constant 0 : index
    %c0_37 = arith.constant 0 : index
    %53 = vector.load %arg5[%c0_36, %c0_37] : memref<8x4xf32, #tpu.memory_space<vmem>>, vector<8x4xf32>
    tpu.vector_store %arg5[%c0_36, %c0_37], %20 {strides = array<i32>} : memref<8x4xf32, #tpu.memory_space<vmem>>, vector<8x4xf32>,
    return
  }
  func.func @transform_0(%arg0: i32) -> (i32, i32) {
    %c0_i32 = arith.constant 0 : i32
    %c0_i32_0 = arith.constant 0 : i32
    return %arg0, %c0_i32 : i32, i32
  }
  func.func @transform_1(%arg0: i32) -> (i32, i32) {
    %c0_i32 = arith.constant 0 : i32
    %c0_i32_0 = arith.constant 0 : i32
    return %arg0, %c0_i32 : i32, i32
  }
  func.func @transform_2(%arg0: i32) -> (i32, i32) {
    %c0_i32 = arith.constant 0 : i32
    %c0_i32_0 = arith.constant 0 : i32
    %c0_i32_1 = arith.constant 0 : i32
    return %c0_i32, %c0_i32_0 : i32, i32
  }
  func.func @transform_3(%arg0: i32) -> (i32, i32) {
    %c0_i32 = arith.constant 0 : i32
    %c0_i32_0 = arith.constant 0 : i32
    return %arg0, %c0_i32 : i32, i32
  }
  func.func @transform_4(%arg0: i32) -> (i32, i32) {
    %c0_i32 = arith.constant 0 : i32
    %c0_i32_0 = arith.constant 0 : i32
    return %arg0, %c0_i32 : i32, i32
  }
}

</mosaic_0001>

<llo_original>
// kernel: tpu_custom_call.1
$region0: #{tpu_custom_call.1}
  #allocation0 [shape = 'u32[]', space=smem, size = 0x4, offset = 0x4, fixed_abs, tag = 'smem constant byte address 0x4 - core index']
  #allocation1 [shape = 'u32[144,128]{1,0:T(1,128)}', space=vmem, size = 0x12000, scoped, tag = 'internal scratch']
  %s0 = inlined_call_operand.vmem [shape: f32[8,64], index: 0, kind: input, shape index: {}]
  %s1 = inlined_call_operand.vmem [shape: f32[8,2], index: 1, kind: input, shape index: {}]
  %s2 = inlined_call_operand.hbm [shape: f32[72,128], index: 2, kind: input, shape index: {}]
  %s3 = inlined_call_operand.hbm [shape: f32[8,64], index: 3, kind: output, shape index: {0}]
  %s4 = inlined_call_operand.vmem [shape: f32[8,4], index: 4, kind: output, shape index: {1}]
  %5 = xla_tuple %s3, %s4
  %s6 = sld [smem:[#allocation0]]
  $region34: #{tpu_custom_call.1} parent=0
    _
  %s8 = ssub.s32 1, %s6
  %s9 = scalar_select 0, %s8, %s6
  $region1: #{tpu_custom_call.1} parent=0
    #allocation2 [shape = 'u8[36864]{0}', space=vmem, size = 0x9000, scoped, tag = 'input window, operand 2, single buffered']
    #allocation3 [shape = 's32[1]{0}', space=sflag, size = 0x4, scoped, tag = 'scoped memory for tpu_custom_call.1']
    #allocation4 [shape = 's32[1]{0}', space=sflag, size = 0x4, scoped, tag = 'scoped memory for tpu_custom_call.1']
    #allocation5 [shape = 'u8[4096]{0}', space=vmem, size = 0x1000, scoped, tag = 'output window, operand 0, single buffered']
    %10 = vsyncpa [#allocation3], 0
    %11 = vsyncpa [#allocation4], 0
    // Predicated region
    $region2: #{tpu_custom_call.1} parent=1 // pred_check
      _
    $region3: #{tpu_custom_call.1} parent=1 // pred_check_branch
      %13 = sbr.rel (0) target = $region5
    $region4: #{tpu_custom_call.1} parent=1 // pred_region
      _
    $region5: #{tpu_custom_call.1} parent=1 // pred_fallthru
      _
    // Predicated region
    $region6: #{tpu_custom_call.1} parent=1 // pred_check
      _
    $region7: #{tpu_custom_call.1} parent=1 // pred_check_branch
      %15 = sbr.rel (0) target = $region9
    $region8: #{tpu_custom_call.1} parent=1 // pred_region
      _
    $region9: #{tpu_custom_call.1} parent=1 // pred_fallthru
      _
    // Predicated region
    $region10: #{tpu_custom_call.1} parent=1 // pred_check
      _
    $region11: #{tpu_custom_call.1} parent=1 // pred_check_branch
      %17 = sbr.rel (0) target = $region13
    $region12: #{tpu_custom_call.1} parent=1 // pred_region
      %s19 = ssub.s32 1152, 1152
      %20 = vsyncadd [#allocation3], %s19
      %s21 = sshll.u32 [#allocation2], 4
      %s22 = int_to_ptr.vmem [resolvable:$true] %s21
      %27 = dma.hbm_to_vmem [thread:$0]  %s2, 1152, %s22, [#allocation3], 128, 128, 8
    $region13: #{tpu_custom_call.1} parent=1 // pred_fallthru
      _
    // Predicated region
    $region14: #{tpu_custom_call.1} parent=1 // pred_check
      _
    $region15: #{tpu_custom_call.1} parent=1 // pred_check_branch
      %29 = sbr.rel (0) target = $region17
    $region16: #{tpu_custom_call.1} parent=1 // pred_region
      %30 = dma.done [#allocation3], 1152
    $region17: #{tpu_custom_call.1} parent=1 // pred_fallthru
      _
    %v31 = vld [vmem:[%s0] sm:$0xff]
    %v32 = vld [vmem:[%s1] sm:$0xff]
    %v33 = vld [vmem:[#allocation2] sm:$0xff]
    %v34 = vld [vmem:[#allocation2 + $0x8] sm:$0xff]
    %v35 = vld [vmem:[#allocation2 + $0x10] sm:$0xff]
    %v36 = vld [vmem:[#allocation2 + $0x18] sm:$0xff]
    %v37 = vld [vmem:[#allocation2 + $0x20] sm:$0xff]
    %v38 = vld [vmem:[#allocation2 + $0x28] sm:$0xff]
    %v39 = vld [vmem:[#allocation2 + $0x30] sm:$0xff]
    %v40 = vld [vmem:[#allocation2 + $0x38] sm:$0xff]
    %v41 = vld [vmem:[#allocation2 + $0x40] sm:$0x1]
    %v42 = vlaneseq
    %v43 = vshrl.u32 %v42, 7
    %v44 = vsub.s32 0, %v43
    %v45 = vrot.slane %v41, %v44
    %vm46 = vcmask 523264
    %v48 = vsel %vm46, %v31, 0
    %50 = vmatprep.subr.mxu0 0.0
    %51 = vmatpush1.msra.mxu0 0.0
    %52 = vmatprep.subr.mxu0 0.0
    %53 = vmatpush1.msra.mxu0 0.0
    %54 = vmatprep.subr.mxu0 0.0
    %55 = vmatpush1.msra.mxu0 0.0
    %56 = vmatprep.subr.mxu0 0.0
    %57 = vmatpush1.msra.mxu0 0.0
    %58 = vmatprep.subr.mxu0 0.0
    %59 = vmatpush1.msra.mxu0 0.0
    %60 = vmatprep.subr.mxu0 0.0
    %61 = vmatpush1.msra.mxu0 0.0
    %62 = vmatprep.subr.mxu0 0.0
    %63 = vmatpush1.msra.mxu0 0.0
    %64 = vmatprep.subr.mxu0 0.0
    %65 = vmatpush1.msra.mxu0 0.0
    %66 = vmatprep.subr.mxu0 0.0
    %67 = vmatpush1.msra.mxu0 %v40
    %68 = vmatprep.subr.mxu0 0.0
    %69 = vmatpush1.msra.mxu0 %v39
    %70 = vmatprep.subr.mxu0 0.0
    %71 = vmatpush1.msra.mxu0 %v38
    %72 = vmatprep.subr.mxu0 0.0
    %73 = vmatpush1.msra.mxu0 %v37
    %74 = vmatprep.subr.mxu0 0.0
    %75 = vmatpush1.msra.mxu0 %v36
    %76 = vmatprep.subr.mxu0 0.0
    %77 = vmatpush1.msra.mxu0 %v35
    %78 = vmatprep.subr.mxu0 0.0
    %79 = vmatpush1.msra.mxu0 %v34
    %80 = vmatprep.subr.mxu0 0.0
    %81 = vmatpush1.msra.mxu0 %v33
    %82 = vmatprep.subr.mxu0 0.0
    %83 = vmatpush2.msra.mxu0 0.0
    %84 = vmatprep.subr.mxu0 0.0
    %85 = vmatpush2.msra.mxu0 0.0
    %86 = vmatprep.subr.mxu0 0.0
    %87 = vmatpush2.msra.mxu0 0.0
    %88 = vmatprep.subr.mxu0 0.0
    %89 = vmatpush2.msra.mxu0 0.0
    %90 = vmatprep.subr.mxu0 0.0
    %91 = vmatpush2.msra.mxu0 0.0
    %92 = vmatprep.subr.mxu0 0.0
    %93 = vmatpush2.msra.mxu0 0.0
    %94 = vmatprep.subr.mxu0 0.0
    %95 = vmatpush2.msra.mxu0 0.0
    %96 = vmatprep.subr.mxu0 0.0
    %97 = vmatpush2.msra.mxu0 0.0
    %98 = vmatprep.subr.mxu0 0.0
    %99 = vmatpush2.msra.mxu0 0.0
    %100 = vmatprep.subr.mxu0 0.0
    %101 = vmatpush2.msra.mxu0 0.0
    %102 = vmatprep.subr.mxu0 0.0
    %103 = vmatpush2.msra.mxu0 0.0
    %104 = vmatprep.subr.mxu0 0.0
    %105 = vmatpush2.msra.mxu0 0.0
    %106 = vmatprep.subr.mxu0 0.0
    %107 = vmatpush2.msra.mxu0 0.0
    %108 = vmatprep.subr.mxu0 0.0
    %109 = vmatpush2.msra.mxu0 0.0
    %110 = vmatprep.subr.mxu0 0.0
    %111 = vmatpush2.msra.mxu0 0.0
    %112 = vmatprep.subr.mxu0 0.0
    %113 = vmatpush2.msra.mxu0 0.0
    %114 = vmatprep.mubr.f32.mxu0 0.0
    %115 = vmatmul.mubr.f32.gmra.mxu0 %v48
    %v116 = vpop.f32.mrf.mxu0
    %v117 = vadd.f32 %v45, %v116
    %v118 = vpop.f32.mrf.mxu0
    %119 = vdwg.mxu0
    %v120 = vmax.f32 %v117, 0.0
    %v121 = vld [vmem:[#allocation2] sm:$0xff]
    %v122 = vld [vmem:[#allocation2 + $0x8] sm:$0xff]
    %v123 = vld [vmem:[#allocation2 + $0x10] sm:$0xff]
    %v124 = vld [vmem:[#allocation2 + $0x18] sm:$0xff]
    %129 = vrot.lane.b32.xlu0 %v121, 32
    %v130 = vpop.permute.xlu0 %129
    %131 = vrot.lane.b32.xlu0 %v122, 32
    %v132 = vpop.permute.xlu0 %131
    %133 = vrot.lane.b32.xlu0 %v123, 32
    %v134 = vpop.permute.xlu0 %133
    %135 = vrot.lane.b32.xlu0 %v124, 32
    %v136 = vpop.permute.xlu0 %135
    %142 = vrot.lane.b32.xlu0 %v45, 96
    %v143 = vpop.permute.xlu0 %142
    %vm145 = vcmask 261120
    %v147 = vsel %vm145, %v120, 0
    %149 = vmatprep.subr.mxu0 0.0
    %150 = vmatpush1.msra.mxu0 0.0
    %151 = vmatprep.subr.mxu0 0.0
    %152 = vmatpush1.msra.mxu0 0.0
    %153 = vmatprep.subr.mxu0 0.0
    %154 = vmatpush1.msra.mxu0 0.0
    %155 = vmatprep.subr.mxu0 0.0
    %156 = vmatpush1.msra.mxu0 0.0
    %157 = vmatprep.subr.mxu0 0.0
    %158 = vmatpush1.msra.mxu0 0.0
    %159 = vmatprep.subr.mxu0 0.0
    %160 = vmatpush1.msra.mxu0 0.0
    %161 = vmatprep.subr.mxu0 0.0
    %162 = vmatpush1.msra.mxu0 0.0
    %163 = vmatprep.subr.mxu0 0.0
    %164 = vmatpush1.msra.mxu0 0.0
    %165 = vmatprep.subr.mxu0 0.0
    %166 = vmatpush1.msra.mxu0 0.0
    %167 = vmatprep.subr.mxu0 0.0
    %168 = vmatpush1.msra.mxu0 0.0
    %169 = vmatprep.subr.mxu0 0.0
    %170 = vmatpush1.msra.mxu0 0.0
    %171 = vmatprep.subr.mxu0 0.0
    %172 = vmatpush1.msra.mxu0 0.0
    %173 = vmatprep.subr.mxu0 0.0
    %174 = vmatpush1.msra.mxu0 %v136
    %175 = vmatprep.subr.mxu0 0.0
    %176 = vmatpush1.msra.mxu0 %v134
    %177 = vmatprep.subr.mxu0 0.0
    %178 = vmatpush1.msra.mxu0 %v132
    %179 = vmatprep.subr.mxu0 0.0
    %180 = vmatpush1.msra.mxu0 %v130
    %181 = vmatprep.subr.mxu0 0.0
    %182 = vmatpush2.msra.mxu0 0.0
    %183 = vmatprep.subr.mxu0 0.0
    %184 = vmatpush2.msra.mxu0 0.0
    %185 = vmatprep.subr.mxu0 0.0
    %186 = vmatpush2.msra.mxu0 0.0
    %187 = vmatprep.subr.mxu0 0.0
    %188 = vmatpush2.msra.mxu0 0.0
    %189 = vmatprep.subr.mxu0 0.0
    %190 = vmatpush2.msra.mxu0 0.0
    %191 = vmatprep.subr.mxu0 0.0
    %192 = vmatpush2.msra.mxu0 0.0
    %193 = vmatprep.subr.mxu0 0.0
    %194 = vmatpush2.msra.mxu0 0.0
    %195 = vmatprep.subr.mxu0 0.0
    %196 = vmatpush2.msra.mxu0 0.0
    %197 = vmatprep.subr.mxu0 0.0
    %198 = vmatpush2.msra.mxu0 0.0
    %199 = vmatprep.subr.mxu0 0.0
    %200 = vmatpush2.msra.mxu0 0.0
    %201 = vmatprep.subr.mxu0 0.0
    %202 = vmatpush2.msra.mxu0 0.0
    %203 = vmatprep.subr.mxu0 0.0
    %204 = vmatpush2.msra.mxu0 0.0
    %205 = vmatprep.subr.mxu0 0.0
    %206 = vmatpush2.msra.mxu0 0.0
    %207 = vmatprep.subr.mxu0 0.0
    %208 = vmatpush2.msra.mxu0 0.0
    %209 = vmatprep.subr.mxu0 0.0
    %210 = vmatpush2.msra.mxu0 0.0
    %211 = vmatprep.subr.mxu0 0.0
    %212 = vmatpush2.msra.mxu0 0.0
    %213 = vmatprep.mubr.f32.mxu0 0.0
    %214 = vmatmul.mubr.f32.gmra.mxu0 %v147
    %v215 = vpop.f32.mrf.mxu0
    %v216 = vadd.f32 %v143, %v215
    %v217 = vpop.f32.mrf.mxu0
    %218 = vdwg.mxu0
    %v219 = vmax.f32 %v216, 0.0
    %v220 = vld [vmem:[#allocation2 + $0x41] sm:$0x1]
    %v221 = vlaneseq
    %v222 = vshrl.u32 %v221, 7
    %v223 = vsub.s32 0, %v222
    %v224 = vrot.slane %v220, %v223
    %229 = vrot.lane.b32.xlu0 %v37, 96
    %v230 = vpop.permute.xlu0 %229
    %231 = vrot.lane.b32.xlu0 %v38, 96
    %v232 = vpop.permute.xlu0 %231
    %233 = vrot.lane.b32.xlu0 %v39, 96
    %v234 = vpop.permute.xlu0 %233
    %235 = vrot.lane.b32.xlu0 %v40, 96
    %v236 = vpop.permute.xlu0 %235
    %242 = vrot.lane.b32.xlu0 %v224, 64
    %v243 = vpop.permute.xlu0 %242
    %v246 = vsel %vm145, %v219, 0
    %248 = vmatprep.subr.mxu0 0.0
    %249 = vmatpush1.msra.mxu0 0.0
    %250 = vmatprep.subr.mxu0 0.0
    %251 = vmatpush1.msra.mxu0 0.0
    %252 = vmatprep.subr.mxu0 0.0
    %253 = vmatpush1.msra.mxu0 0.0
    %254 = vmatprep.subr.mxu0 0.0
    %255 = vmatpush1.msra.mxu0 0.0
    %256 = vmatprep.subr.mxu0 0.0
    %257 = vmatpush1.msra.mxu0 0.0
    %258 = vmatprep.subr.mxu0 0.0
    %259 = vmatpush1.msra.mxu0 0.0
    %260 = vmatprep.subr.mxu0 0.0
    %261 = vmatpush1.msra.mxu0 0.0
    %262 = vmatprep.subr.mxu0 0.0
    %263 = vmatpush1.msra.mxu0 0.0
    %264 = vmatprep.subr.mxu0 0.0
    %265 = vmatpush1.msra.mxu0 0.0
    %266 = vmatprep.subr.mxu0 0.0
    %267 = vmatpush1.msra.mxu0 0.0
    %268 = vmatprep.subr.mxu0 0.0
    %269 = vmatpush1.msra.mxu0 0.0
    %270 = vmatprep.subr.mxu0 0.0
    %271 = vmatpush1.msra.mxu0 0.0
    %272 = vmatprep.subr.mxu0 0.0
    %273 = vmatpush1.msra.mxu0 %v236
    %274 = vmatprep.subr.mxu0 0.0
    %275 = vmatpush1.msra.mxu0 %v234
    %276 = vmatprep.subr.mxu0 0.0
    %277 = vmatpush1.msra.mxu0 %v232
    %278 = vmatprep.subr.mxu0 0.0
    %279 = vmatpush1.msra.mxu0 %v230
    %280 = vmatprep.subr.mxu0 0.0
    %281 = vmatpush2.msra.mxu0 0.0
    %282 = vmatprep.subr.mxu0 0.0
    %283 = vmatpush2.msra.mxu0 0.0
    %284 = vmatprep.subr.mxu0 0.0
    %285 = vmatpush2.msra.mxu0 0.0
    %286 = vmatprep.subr.mxu0 0.0
    %287 = vmatpush2.msra.mxu0 0.0
    %288 = vmatprep.subr.mxu0 0.0
    %289 = vmatpush2.msra.mxu0 0.0
    %290 = vmatprep.subr.mxu0 0.0
    %291 = vmatpush2.msra.mxu0 0.0
    %292 = vmatprep.subr.mxu0 0.0
    %293 = vmatpush2.msra.mxu0 0.0
    %294 = vmatprep.subr.mxu0 0.0
    %295 = vmatpush2.msra.mxu0 0.0
    %296 = vmatprep.subr.mxu0 0.0
    %297 = vmatpush2.msra.mxu0 0.0
    %298 = vmatprep.subr.mxu0 0.0
    %299 = vmatpush2.msra.mxu0 0.0
    %300 = vmatprep.subr.mxu0 0.0
    %301 = vmatpush2.msra.mxu0 0.0
    %302 = vmatprep.subr.mxu0 0.0
    %303 = vmatpush2.msra.mxu0 0.0
    %304 = vmatprep.subr.mxu0 0.0
    %305 = vmatpush2.msra.mxu0 0.0
    %306 = vmatprep.subr.mxu0 0.0
    %307 = vmatpush2.msra.mxu0 0.0
    %308 = vmatprep.subr.mxu0 0.0
    %309 = vmatpush2.msra.mxu0 0.0
    %310 = vmatprep.subr.mxu0 0.0
    %311 = vmatpush2.msra.mxu0 0.0
    %312 = vmatprep.mubr.f32.mxu0 0.0
    %313 = vmatmul.mubr.f32.gmra.mxu0 %v246
    %v314 = vpop.f32.mrf.mxu0
    %v315 = vadd.f32 %v243, %v314
    %v316 = vpop.f32.mrf.mxu0
    %317 = vdwg.mxu0
    %v318 = vmul.f32 %v315, 0.5
    %v319 = vmul.f32 %v318, 1.442695
    %v320 = vpow.pop %v319
    %322 = vrot.lane.b32.xlu0 %v320, 126
    %v323 = vpop.permute.xlu0 %322
    %v325 = vmul.f32 %v32, %v323
    %v326 = vadd.f32 %v315, %v325
    %v327 = vld [vmem:[#allocation2 + $0x20] sm:$0x3]
    %329 = vrot.lane.b32.xlu0 %v327, 64
    %v330 = vpop.permute.xlu0 %329
    %331 = vrot.lane.b32.xlu0 %v45, 64
    %v332 = vpop.permute.xlu0 %331
    %vm334 = vcmask 15360
    %v336 = vsel %vm334, %v326, 0
    %vm338 = vcmask 1041408
    %v339 = vsel %vm338, %v330, 0
    %341 = vmatprep.subr.mxu0 0.0
    %342 = vmatpush1.msra.mxu0 0.0
    %343 = vmatprep.subr.mxu0 0.0
    %344 = vmatpush1.msra.mxu0 0.0
    %345 = vmatprep.subr.mxu0 0.0
    %346 = vmatpush1.msra.mxu0 0.0
    %347 = vmatprep.subr.mxu0 0.0
    %348 = vmatpush1.msra.mxu0 0.0
    %349 = vmatprep.subr.mxu0 0.0
    %350 = vmatpush1.msra.mxu0 0.0
    %351 = vmatprep.subr.mxu0 0.0
    %352 = vmatpush1.msra.mxu0 0.0
    %353 = vmatprep.subr.mxu0 0.0
    %354 = vmatpush1.msra.mxu0 0.0
    %355 = vmatprep.subr.mxu0 0.0
    %356 = vmatpush1.msra.mxu0 0.0
    %357 = vmatprep.subr.mxu0 0.0
    %358 = vmatpush1.msra.mxu0 0.0
    %359 = vmatprep.subr.mxu0 0.0
    %360 = vmatpush1.msra.mxu0 0.0
    %361 = vmatprep.subr.mxu0 0.0
    %362 = vmatpush1.msra.mxu0 0.0
    %363 = vmatprep.subr.mxu0 0.0
    %364 = vmatpush1.msra.mxu0 0.0
    %365 = vmatprep.subr.mxu0 0.0
    %366 = vmatpush1.msra.mxu0 0.0
    %367 = vmatprep.subr.mxu0 0.0
    %368 = vmatpush1.msra.mxu0 0.0
    %369 = vmatprep.subr.mxu0 0.0
    %370 = vmatpush1.msra.mxu0 0.0
    %371 = vmatprep.subr.mxu0 0.0
    %372 = vmatpush1.msra.mxu0 %v339
    %373 = vmatprep.subr.mxu0 0.0
    %374 = vmatpush2.msra.mxu0 0.0
    %375 = vmatprep.subr.mxu0 0.0
    %376 = vmatpush2.msra.mxu0 0.0
    %377 = vmatprep.subr.mxu0 0.0
    %378 = vmatpush2.msra.mxu0 0.0
    %379 = vmatprep.subr.mxu0 0.0
    %380 = vmatpush2.msra.mxu0 0.0
    %381 = vmatprep.subr.mxu0 0.0
    %382 = vmatpush2.msra.mxu0 0.0
    %383 = vmatprep.subr.mxu0 0.0
    %384 = vmatpush2.msra.mxu0 0.0
    %385 = vmatprep.subr.mxu0 0.0
    %386 = vmatpush2.msra.mxu0 0.0
    %387 = vmatprep.subr.mxu0 0.0
    %388 = vmatpush2.msra.mxu0 0.0
    %389 = vmatprep.subr.mxu0 0.0
    %390 = vmatpush2.msra.mxu0 0.0
    %391 = vmatprep.subr.mxu0 0.0
    %392 = vmatpush2.msra.mxu0 0.0
    %393 = vmatprep.subr.mxu0 0.0
    %394 = vmatpush2.msra.mxu0 0.0
    %395 = vmatprep.subr.mxu0 0.0
    %396 = vmatpush2.msra.mxu0 0.0
    %397 = vmatprep.subr.mxu0 0.0
    %398 = vmatpush2.msra.mxu0 0.0
    %399 = vmatprep.subr.mxu0 0.0
    %400 = vmatpush2.msra.mxu0 0.0
    %401 = vmatprep.subr.mxu0 0.0
    %402 = vmatpush2.msra.mxu0 0.0
    %403 = vmatprep.subr.mxu0 0.0
    %404 = vmatpush2.msra.mxu0 0.0
    %405 = vmatprep.mubr.f32.mxu0 0.0
    %406 = vmatmul.mubr.f32.gmra.mxu0 %v336
    %v407 = vpop.f32.mrf.mxu0
    %v408 = vadd.f32 %v332, %v407
    %v409 = vpop.f32.mrf.mxu0
    %410 = vdwg.mxu0
    %v411 = vmax.f32 %v408, 0.0
    %412 = vrot.lane.b32.xlu0 %v37, 32
    %v413 = vpop.permute.xlu0 %412
    %414 = vrot.lane.b32.xlu0 %v38, 32
    %v415 = vpop.permute.xlu0 %414
    %416 = vrot.lane.b32.xlu0 %v39, 32
    %v417 = vpop.permute.xlu0 %416
    %418 = vrot.lane.b32.xlu0 %v40, 32
    %v419 = vpop.permute.xlu0 %418
    %424 = vrot.lane.b32.xlu0 %v45, 32
    %v425 = vpop.permute.xlu0 %424
    %v428 = vsel %vm145, %v411, 0
    %430 = vmatprep.subr.mxu0 0.0
    %431 = vmatpush1.msra.mxu0 0.0
    %432 = vmatprep.subr.mxu0 0.0
    %433 = vmatpush1.msra.mxu0 0.0
    %434 = vmatprep.subr.mxu0 0.0
    %435 = vmatpush1.msra.mxu0 0.0
    %436 = vmatprep.subr.mxu0 0.0
    %437 = vmatpush1.msra.mxu0 0.0
    %438 = vmatprep.subr.mxu0 0.0
    %439 = vmatpush1.msra.mxu0 0.0
    %440 = vmatprep.subr.mxu0 0.0
    %441 = vmatpush1.msra.mxu0 0.0
    %442 = vmatprep.subr.mxu0 0.0
    %443 = vmatpush1.msra.mxu0 0.0
    %444 = vmatprep.subr.mxu0 0.0
    %445 = vmatpush1.msra.mxu0 0.0
    %446 = vmatprep.subr.mxu0 0.0
    %447 = vmatpush1.msra.mxu0 0.0
    %448 = vmatprep.subr.mxu0 0.0
    %449 = vmatpush1.msra.mxu0 0.0
    %450 = vmatprep.subr.mxu0 0.0
    %451 = vmatpush1.msra.mxu0 0.0
    %452 = vmatprep.subr.mxu0 0.0
    %453 = vmatpush1.msra.mxu0 0.0
    %454 = vmatprep.subr.mxu0 0.0
    %455 = vmatpush1.msra.mxu0 %v419
    %456 = vmatprep.subr.mxu0 0.0
    %457 = vmatpush1.msra.mxu0 %v417
    %458 = vmatprep.subr.mxu0 0.0
    %459 = vmatpush1.msra.mxu0 %v415
    %460 = vmatprep.subr.mxu0 0.0
    %461 = vmatpush1.msra.mxu0 %v413
    %462 = vmatprep.subr.mxu0 0.0
    %463 = vmatpush2.msra.mxu0 0.0
    %464 = vmatprep.subr.mxu0 0.0
    %465 = vmatpush2.msra.mxu0 0.0
    %466 = vmatprep.subr.mxu0 0.0
    %467 = vmatpush2.msra.mxu0 0.0
    %468 = vmatprep.subr.mxu0 0.0
    %469 = vmatpush2.msra.mxu0 0.0
    %470 = vmatprep.subr.mxu0 0.0
    %471 = vmatpush2.msra.mxu0 0.0
    %472 = vmatprep.subr.mxu0 0.0
    %473 = vmatpush2.msra.mxu0 0.0
    %474 = vmatprep.subr.mxu0 0.0
    %475 = vmatpush2.msra.mxu0 0.0
    %476 = vmatprep.subr.mxu0 0.0
    %477 = vmatpush2.msra.mxu0 0.0
    %478 = vmatprep.subr.mxu0 0.0
    %479 = vmatpush2.msra.mxu0 0.0
    %480 = vmatprep.subr.mxu0 0.0
    %481 = vmatpush2.msra.mxu0 0.0
    %482 = vmatprep.subr.mxu0 0.0
    %483 = vmatpush2.msra.mxu0 0.0
    %484 = vmatprep.subr.mxu0 0.0
    %485 = vmatpush2.msra.mxu0 0.0
    %486 = vmatprep.subr.mxu0 0.0
    %487 = vmatpush2.msra.mxu0 0.0
    %488 = vmatprep.subr.mxu0 0.0
    %489 = vmatpush2.msra.mxu0 0.0
    %490 = vmatprep.subr.mxu0 0.0
    %491 = vmatpush2.msra.mxu0 0.0
    %492 = vmatprep.subr.mxu0 0.0
    %493 = vmatpush2.msra.mxu0 0.0
    %494 = vmatprep.mubr.f32.mxu0 0.0
    %495 = vmatmul.mubr.f32.gmra.mxu0 %v428
    %v496 = vpop.f32.mrf.mxu0
    %v497 = vadd.f32 %v425, %v496
    %v498 = vpop.f32.mrf.mxu0
    %499 = vdwg.mxu0
    %v500 = vmax.f32 %v497, 0.0
    %501 = vrot.lane.b32.xlu0 %v121, 96
    %v502 = vpop.permute.xlu0 %501
    %503 = vrot.lane.b32.xlu0 %v122, 96
    %v504 = vpop.permute.xlu0 %503
    %505 = vrot.lane.b32.xlu0 %v123, 96
    %v506 = vpop.permute.xlu0 %505
    %507 = vrot.lane.b32.xlu0 %v124, 96
    %v508 = vpop.permute.xlu0 %507
    %v514 = vsel %vm145, %v500, 0
    %516 = vmatprep.subr.mxu0 0.0
    %517 = vmatpush1.msra.mxu0 0.0
    %518 = vmatprep.subr.mxu0 0.0
    %519 = vmatpush1.msra.mxu0 0.0
    %520 = vmatprep.subr.mxu0 0.0
    %521 = vmatpush1.msra.mxu0 0.0
    %522 = vmatprep.subr.mxu0 0.0
    %523 = vmatpush1.msra.mxu0 0.0
    %524 = vmatprep.subr.mxu0 0.0
    %525 = vmatpush1.msra.mxu0 0.0
    %526 = vmatprep.subr.mxu0 0.0
    %527 = vmatpush1.msra.mxu0 0.0
    %528 = vmatprep.subr.mxu0 0.0
    %529 = vmatpush1.msra.mxu0 0.0
    %530 = vmatprep.subr.mxu0 0.0
    %531 = vmatpush1.msra.mxu0 0.0
    %532 = vmatprep.subr.mxu0 0.0
    %533 = vmatpush1.msra.mxu0 0.0
    %534 = vmatprep.subr.mxu0 0.0
    %535 = vmatpush1.msra.mxu0 0.0
    %536 = vmatprep.subr.mxu0 0.0
    %537 = vmatpush1.msra.mxu0 0.0
    %538 = vmatprep.subr.mxu0 0.0
    %539 = vmatpush1.msra.mxu0 0.0
    %540 = vmatprep.subr.mxu0 0.0
    %541 = vmatpush1.msra.mxu0 %v508
    %542 = vmatprep.subr.mxu0 0.0
    %543 = vmatpush1.msra.mxu0 %v506
    %544 = vmatprep.subr.mxu0 0.0
    %545 = vmatpush1.msra.mxu0 %v504
    %546 = vmatprep.subr.mxu0 0.0
    %547 = vmatpush1.msra.mxu0 %v502
    %548 = vmatprep.subr.mxu0 0.0
    %549 = vmatpush2.msra.mxu0 0.0
    %550 = vmatprep.subr.mxu0 0.0
    %551 = vmatpush2.msra.mxu0 0.0
    %552 = vmatprep.subr.mxu0 0.0
    %553 = vmatpush2.msra.mxu0 0.0
    %554 = vmatprep.subr.mxu0 0.0
    %555 = vmatpush2.msra.mxu0 0.0
    %556 = vmatprep.subr.mxu0 0.0
    %557 = vmatpush2.msra.mxu0 0.0
    %558 = vmatprep.subr.mxu0 0.0
    %559 = vmatpush2.msra.mxu0 0.0
    %560 = vmatprep.subr.mxu0 0.0
    %561 = vmatpush2.msra.mxu0 0.0
    %562 = vmatprep.subr.mxu0 0.0
    %563 = vmatpush2.msra.mxu0 0.0
    %564 = vmatprep.subr.mxu0 0.0
    %565 = vmatpush2.msra.mxu0 0.0
    %566 = vmatprep.subr.mxu0 0.0
    %567 = vmatpush2.msra.mxu0 0.0
    %568 = vmatprep.subr.mxu0 0.0
    %569 = vmatpush2.msra.mxu0 0.0
    %570 = vmatprep.subr.mxu0 0.0
    %571 = vmatpush2.msra.mxu0 0.0
    %572 = vmatprep.subr.mxu0 0.0
    %573 = vmatpush2.msra.mxu0 0.0
    %574 = vmatprep.subr.mxu0 0.0
    %575 = vmatpush2.msra.mxu0 0.0
    %576 = vmatprep.subr.mxu0 0.0
    %577 = vmatpush2.msra.mxu0 0.0
    %578 = vmatprep.subr.mxu0 0.0
    %579 = vmatpush2.msra.mxu0 0.0
    %580 = vmatprep.mubr.f32.mxu0 0.0
    %581 = vmatmul.mubr.f32.gmra.mxu0 %v514
    %v582 = vpop.f32.mrf.mxu0
    %v583 = vadd.f32 %v224, %v582
    %v584 = vpop.f32.mrf.mxu0
    %585 = vdwg.mxu0
    %v586 = vxor.u32 %v583, 2147483648
    %v587 = vmul.f32 %v586, 1.442695
    %v588 = vpow.pop %v587
    %v589 = vadd.f32 %v588, 1.0
    %v590 = vrcp.pop %v589
    %v591 = vmul.f32 1.0, %v590
    %592 = vst.msk [vmem:[#allocation5] sm:$0xff] %vm46, %v591
    %vm593 = vcmask 31744
    %594 = vst.msk [vmem:[%s4] sm:$0xff] %vm593, %v315
    // Predicated region
    $region18: #{tpu_custom_call.1} parent=1 // pred_check
      _
    $region19: #{tpu_custom_call.1} parent=1 // pred_check_branch
      %596 = sbr.rel (0) target = $region21
    $region20: #{tpu_custom_call.1} parent=1 // pred_region
      %s598 = ssub.s32 128, 128
      %599 = vsyncadd [#allocation4], %s598
      %s601 = sshll.u32 [#allocation5], 4
      %s602 = int_to_ptr.vmem [resolvable:$true] %s601
      %604 = dma.vmem_to_hbm [thread:$0]  %s602, 128, %s3, [#allocation4]
    $region21: #{tpu_custom_call.1} parent=1 // pred_fallthru
      _
    // Predicated region
    $region22: #{tpu_custom_call.1} parent=1 // pred_check
      _
    $region23: #{tpu_custom_call.1} parent=1 // pred_check_branch
      %606 = sbr.rel (0) target = $region25
    $region24: #{tpu_custom_call.1} parent=1 // pred_region
      _
    $region25: #{tpu_custom_call.1} parent=1 // pred_fallthru
      _
    // Predicated region
    $region26: #{tpu_custom_call.1} parent=1 // pred_check
      _
    $region27: #{tpu_custom_call.1} parent=1 // pred_check_branch
      %608 = sbr.rel (0) target = $region29
    $region28: #{tpu_custom_call.1} parent=1 // pred_region
      %609 = dma.done [#allocation4], 128
    $region29: #{tpu_custom_call.1} parent=1 // pred_fallthru
      _
    // Predicated region
    $region30: #{tpu_custom_call.1} parent=1 // pred_check
      _
    $region31: #{tpu_custom_call.1} parent=1 // pred_check_branch
      %611 = sbr.rel (0) target = $region33
    $region32: #{tpu_custom_call.1} parent=1 // pred_region
      _
    $region33: #{tpu_custom_call.1} parent=1 // pred_fallthru
      _
    %612 = vsyncpa [#allocation3], 1
    %613 = vsyncpa [#allocation4], 1

</llo_original>
